<compile_context>
chip_gen: v7x
topology: tpu7x:2x2x1
jax: 0.10.0
libtpu: 0.0.40
codegen_flags: <defaults>
</compile_context>

<pallas_src>
import functools

import jax
import jax.numpy as jnp
from jax.experimental import pallas as pl
from jax.experimental.pallas import tpu as pltpu


def _round_up(x, m):
    return ((x + m - 1) // m) * m


def _predictor_kernel(x_ref, w_ref, b_ref, r_ref, scores_ref, deltas_ref, *, n_cls):
    # Main matmul: (tn, C) @ (C, col_pad) with f32 accumulation on the MXU.
    # x is cast to the weight dtype (bf16 by default) so the matmul uses the
    # native bf16 MXU path on v5e/v6e/v7x; no-op if the caller already passes
    # bf16 activations.
    x = x_ref[...].astype(w_ref.dtype)
    acc = jnp.dot(x, w_ref[...], preferred_element_type=jnp.float32)
    acc = acc + b_ref[...]                      # bias kept in f32

    # scores = first n_cls columns (lane-0-aligned static slice, cheap).
    scores_ref[...] = acc[:, :n_cls].astype(scores_ref.dtype)

    # deltas = the 4 bbox columns replicated num_classes times.  r_ref is a
    # 0/1 selection matrix, so this tiny f32 matmul reproduces
    # torch.cat([bbox_deltas]*num_classes, dim=1) exactly (bit-identical
    # replicas) while keeping the expensive x-matmul only col_pad wide.
    deltas = jnp.dot(acc, r_ref[...], preferred_element_type=jnp.float32)
    deltas_ref[...] = deltas.astype(deltas_ref.dtype)


def prepare_predictor_params(wc, bc, wb, bb, *, num_classes,
                             compute_dtype=jnp.bfloat16):
    """Fuse/pad the two Linear heads ONCE (hoisted out of the per-call path).

    wc: (C, n_cls), bc: (n_cls,) or (1, n_cls)   -- cls_score
    wb: (C, 4),     bb: (4,)   or (1, 4)         -- bbox_pred (class-agnostic)
    """
    c, n_cls = wc.shape
    n_box = wb.shape[1]
    assert n_cls == num_classes
    bc2 = bc.reshape(1, n_cls).astype(jnp.float32)
    bb2 = bb.reshape(1, n_box).astype(jnp.float32)

    # Narrow fused slab [Wc | Wb], zero-padded to a multiple of 128 lanes.
    col = n_cls + n_box
    col_pad = _round_up(col, 128)
    w_fused = jnp.concatenate([wc, wb], axis=1)
    w_fused = jnp.pad(w_fused, ((0, 0), (0, col_pad - col))).astype(compute_dtype)
    b_fused = jnp.pad(jnp.concatenate([bc2, bb2], axis=1),
                      ((0, 0), (0, col_pad - col)))                 # f32

    # 0/1 selection matrix: output delta column j picks acc column n_cls+(j%4).
    d_out = n_box * num_classes
    rows = jnp.arange(col_pad)[:, None]
    cols = jnp.arange(d_out)[None, :]
    rep = (rows == (n_cls + cols % n_box)).astype(jnp.float32)

    return dict(w_fused=w_fused, b_fused=b_fused, rep=rep,
                n_cls=n_cls, n_box=n_box, num_classes=num_classes)


def faster_rcnn_predictor(x, params, *, row_tile=512):
    """x: (N, C) or (N, C, 1, 1). Returns (scores (N, n_cls), deltas (N, 4*n_cls))."""
    if x.ndim == 4:
        assert x.shape[2] == 1 and x.shape[3] == 1
    x2 = x.reshape(x.shape[0], -1)                      # flatten(start_dim=1)
    n, c = x2.shape
    out_dtype = x.dtype

    w_fused, b_fused, rep = params["w_fused"], params["b_fused"], params["rep"]
    n_cls = params["n_cls"]
    d_out = params["n_box"] * params["num_classes"]
    col_pad = w_fused.shape[1]
    assert w_fused.shape[0] == c

    # bf16 activations halve the dominant HBM read and keep the MXU on its
    # native bf16 path (f32 accumulation in-kernel).  For peak perf the
    # producer of x should already emit bf16 so this cast fuses away upstream.
    x2 = x2.astype(w_fused.dtype)

    # Row tiling: NO padding/copy of x and NO post-slice of the outputs —
    # grid = cdiv(n, tn) and Pallas masks the partial last block (tn is a
    # multiple of 8, block last dims equal the full array dims).  tn is capped
    # at ceil(n/2) so the "parallel" axis always has >= 2 steps for v7x's two
    # TensorCores, while 512-row tiles keep large N near the HBM roofline.
    tn = min(row_tile, _round_up(pl.cdiv(n, 2), 8))
    grid = (pl.cdiv(n, tn),)

    kernel = functools.partial(_predictor_kernel, n_cls=n_cls)

    # Note on VMEM: the fused weight is only C*128*2B (~0.25 MiB at C=1024) and
    # rep ~0.2 MiB, so double-buffering the constant operands is immaterial;
    # single-buffering them (pl.Buffered(1)) is unnecessary after the
    # narrow-weight + bf16 changes.  vmem_limit covers row_tile up to 1024 even
    # on v5e's 16 MiB scoped default.
    scores, deltas = pl.pallas_call(
        kernel,
        out_shape=(jax.ShapeDtypeStruct((n, n_cls), out_dtype),
                   jax.ShapeDtypeStruct((n, d_out), out_dtype)),
        grid_spec=pltpu.PrefetchScalarGridSpec(
            num_scalar_prefetch=0,
            grid=grid,
            in_specs=[
                pl.BlockSpec((tn, c), lambda i: (i, 0)),           # x tile (pipelined)
                pl.BlockSpec((c, col_pad), lambda i: (0, 0)),      # fused W (VMEM-resident)
                pl.BlockSpec((1, col_pad), lambda i: (0, 0)),      # fused bias
                pl.BlockSpec((col_pad, d_out), lambda i: (0, 0)),  # replication matrix
            ],
            out_specs=[
                pl.BlockSpec((tn, n_cls), lambda i: (i, 0)),       # scores
                pl.BlockSpec((tn, d_out), lambda i: (i, 0)),       # bbox deltas
            ],
        ),
        compiler_params=pltpu.CompilerParams(
            # N-tiles are independent -> shard across both TCs on v7x.
            dimension_semantics=("parallel",),
            vmem_limit_bytes=48 << 20),
    )(x2, w_fused, b_fused, rep)
    # TODO(synk): tile the C (reduction) axis if C*row_tile ever outgrows VMEM
    # (not the case for typical backbone feature sizes, C ~= 1024).
    return scores, deltas


if __name__ == "__main__":
    # Small, deterministic setup consistent with the module:
    #   cls_score: Linear(C, num_classes), bbox_pred: Linear(C, 4)
    N, C = 8, 32
    NUM_CLASSES = 8
    BOX_DIM = 4

    key = jax.random.PRNGKey(0)
    kx, kwc, kbc, kwb, kbb = jax.random.split(key, 5)

    x = jax.random.normal(kx, (N, C, 1, 1), dtype=jnp.float32)      # NCHW, 1x1 spatial
    wc = jax.random.normal(kwc, (C, NUM_CLASSES), dtype=jnp.float32) * 0.05
    bc = jax.random.normal(kbc, (1, NUM_CLASSES), dtype=jnp.float32) * 0.05
    wb = jax.random.normal(kwb, (C, BOX_DIM), dtype=jnp.float32) * 0.05
    bb = jax.random.normal(kbb, (1, BOX_DIM), dtype=jnp.float32) * 0.05

    # Pure-JAX reference (module semantics, f32).
    xf = x.reshape(N, -1)
    scores_ref = xf @ wc + bc
    deltas_ref = jnp.tile(xf @ wb + bb, (1, NUM_CLASSES))

    # --- f32 path: exact module numerics ---
    params32 = prepare_predictor_params(wc, bc, wb, bb, num_classes=NUM_CLASSES,
                                        compute_dtype=jnp.float32)
    s32, d32 = faster_rcnn_predictor(x, params32)
    jax.block_until_ready((s32, d32))
    assert s32.shape == (N, NUM_CLASSES)
    assert d32.shape == (N, BOX_DIM * NUM_CLASSES)
    assert jnp.allclose(s32, scores_ref, atol=1e-5, rtol=1e-5)
    assert jnp.allclose(d32, deltas_ref, atol=1e-5, rtol=1e-5)

    # --- bf16 path (production default): looser tolerance, exact replication ---
    params16 = prepare_predictor_params(wc, bc, wb, bb, num_classes=NUM_CLASSES,
                                        compute_dtype=jnp.bfloat16)
    s16, d16 = faster_rcnn_predictor(x, params16)
    jax.block_until_ready((s16, d16))
    assert jnp.allclose(s16, scores_ref, atol=2e-2, rtol=2e-2)
    assert jnp.allclose(d16, deltas_ref, atol=2e-2, rtol=2e-2)
    # class replicas of the bbox deltas must be bit-identical (torch.cat semantics)
    assert bool(jnp.all(d16.reshape(N, NUM_CLASSES, BOX_DIM)
                        == d16.reshape(N, NUM_CLASSES, BOX_DIM)[:, :1, :]))

    print("KERNEL_OK")
</pallas_src>

<mosaic_0001>
module attributes {stable_mosaic.version = 11 : i64} {
  func.func @_predictor_kernel(%arg0: i32, %arg1: memref<8x32xf32, #tpu.memory_space<vmem>>, %arg2: memref<32x128xf32, #tpu.memory_space<vmem>>, %arg3: memref<1x128xf32, #tpu.memory_space<vmem>>, %arg4: memref<128x32xf32, #tpu.memory_space<vmem>>, %arg5: memref<8x8xf32, #tpu.memory_space<vmem>>, %arg6: memref<8x32xf32, #tpu.memory_space<vmem>>) attributes {dimension_semantics = [#tpu.dimension_semantics<parallel>], iteration_bounds = array<i64: 1>, scalar_prefetch = 0 : i64, scratch_operands = 0 : i64, tpu.core_type = #tpu.core_type<tc>, window_params = [{transform_indices = @transform_0, window_bounds = array<i64: 8, 32>}, {pipeline_mode = #tpu.pipeline_mode<synchronous>, transform_indices = @transform_1, window_bounds = array<i64: 32, 128>}, {pipeline_mode = #tpu.pipeline_mode<synchronous>, transform_indices = @transform_2, window_bounds = array<i64: 1, 128>}, {pipeline_mode = #tpu.pipeline_mode<synchronous>, transform_indices = @transform_3, window_bounds = array<i64: 128, 32>}, {transform_indices = @transform_4, window_bounds = array<i64: 8, 8>}, {transform_indices = @transform_5, window_bounds = array<i64: 8, 32>}]} {
    %c0 = arith.constant 0 : index
    %c0_0 = arith.constant 0 : index
    %0 = vector.load %arg1[%c0, %c0_0] : memref<8x32xf32, #tpu.memory_space<vmem>>, vector<8x32xf32>
    %c0_1 = arith.constant 0 : index
    %c0_2 = arith.constant 0 : index
    %1 = vector.load %arg2[%c0_1, %c0_2] : memref<32x128xf32, #tpu.memory_space<vmem>>, vector<32x128xf32>
    %cst = arith.constant dense<0.000000e+00> : vector<8x128xf32>
    %2 = tpu.matmul %0, %1, %cst {dimension_numbers = #tpu.dot_dimension_numbers<[1], [0], [0], [1], [0, 0, 1, 1], [], []>} : vector<8x32xf32>, vector<32x128xf32>, vector<8x128xf32> -> vector<8x128xf32>
    %c0_3 = arith.constant 0 : index
    %c0_4 = arith.constant 0 : index
    %3 = vector.load %arg3[%c0_3, %c0_4] : memref<1x128xf32, #tpu.memory_space<vmem>>, vector<1x128xf32>
    %4 = vector.broadcast %3 : vector<1x128xf32> to vector<8x128xf32>
    %5 = arith.addf %2, %4 : vector<8x128xf32>
    %6 = vector.extract_strided_slice %5 {offsets = [0, 0], sizes = [8, 8], strides = [1, 1]} : vector<8x128xf32> to vector<8x8xf32>
    %c0_5 = arith.constant 0 : index
    %c0_6 = arith.constant 0 : index
    %7 = vector.load %arg5[%c0_5, %c0_6] : memref<8x8xf32, #tpu.memory_space<vmem>>, vector<8x8xf32>
    tpu.vector_store %arg5[%c0_5, %c0_6], %6 {strides = array<i32>} : memref<8x8xf32, #tpu.memory_space<vmem>>, vector<8x8xf32>,
    %c0_7 = arith.constant 0 : index
    %c0_8 = arith.constant 0 : index
    %8 = vector.load %arg4[%c0_7, %c0_8] : memref<128x32xf32, #tpu.memory_space<vmem>>, vector<128x32xf32>
    %cst_9 = arith.constant dense<0.000000e+00> : vector<8x32xf32>
    %9 = tpu.matmul %5, %8, %cst_9 {dimension_numbers = #tpu.dot_dimension_numbers<[1], [0], [0], [1], [0, 0, 1, 1], [], []>} : vector<8x128xf32>, vector<128x32xf32>, vector<8x32xf32> -> vector<8x32xf32>
    %c0_10 = arith.constant 0 : index
    %c0_11 = arith.constant 0 : index
    %10 = vector.load %arg6[%c0_10, %c0_11] : memref<8x32xf32, #tpu.memory_space<vmem>>, vector<8x32xf32>
    tpu.vector_store %arg6[%c0_10, %c0_11], %9 {strides = array<i32>} : memref<8x32xf32, #tpu.memory_space<vmem>>, vector<8x32xf32>,
    return
  }
  func.func @transform_0(%arg0: i32) -> (i32, i32) {
    %c0_i32 = arith.constant 0 : i32
    %c0_i32_0 = arith.constant 0 : i32
    return %arg0, %c0_i32 : i32, i32
  }
  func.func @transform_1(%arg0: i32) -> (i32, i32) {
    %c0_i32 = arith.constant 0 : i32
    %c0_i32_0 = arith.constant 0 : i32
    %c0_i32_1 = arith.constant 0 : i32
    return %c0_i32, %c0_i32_0 : i32, i32
  }
  func.func @transform_2(%arg0: i32) -> (i32, i32) {
    %c0_i32 = arith.constant 0 : i32
    %c0_i32_0 = arith.constant 0 : i32
    %c0_i32_1 = arith.constant 0 : i32
    return %c0_i32, %c0_i32_0 : i32, i32
  }
  func.func @transform_3(%arg0: i32) -> (i32, i32) {
    %c0_i32 = arith.constant 0 : i32
    %c0_i32_0 = arith.constant 0 : i32
    %c0_i32_1 = arith.constant 0 : i32
    return %c0_i32, %c0_i32_0 : i32, i32
  }
  func.func @transform_4(%arg0: i32) -> (i32, i32) {
    %c0_i32 = arith.constant 0 : i32
    %c0_i32_0 = arith.constant 0 : i32
    return %arg0, %c0_i32 : i32, i32
  }
  func.func @transform_5(%arg0: i32) -> (i32, i32) {
    %c0_i32 = arith.constant 0 : i32
    %c0_i32_0 = arith.constant 0 : i32
    return %arg0, %c0_i32 : i32, i32
  }
}

</mosaic_0001>

<llo_original>
// kernel: tpu_custom_call.1
$region0: #{tpu_custom_call.1}
  #allocation0 [shape = 'u32[]', space=smem, size = 0x4, offset = 0x4, fixed_abs, tag = 'smem constant byte address 0x4 - core index']
  #allocation1 [shape = 'u32[144,128]{1,0:T(1,128)}', space=vmem, size = 0x12000, scoped, tag = 'internal scratch']
  %s0 = inlined_call_operand.vmem [shape: f32[8,32], index: 0, kind: input, shape index: {}]
  %s1 = inlined_call_operand.vmem [shape: f32[32,128], index: 1, kind: input, shape index: {}]
  %s2 = inlined_call_operand.vmem [shape: f32[1,128], index: 2, kind: input, shape index: {}]
  %s3 = inlined_call_operand.vmem [shape: f32[128,32], index: 3, kind: input, shape index: {}]
  %s4 = inlined_call_operand.hbm [shape: f32[8,8], index: 4, kind: output, shape index: {0}]
  %s5 = inlined_call_operand.hbm [shape: f32[8,32], index: 5, kind: output, shape index: {1}]
  %6 = xla_tuple %s4, %s5
  %s7 = sld [smem:[#allocation0]]
  $region34: #{tpu_custom_call.1} parent=0
    _
  %s9 = ssub.s32 1, %s7
  %s10 = scalar_select 0, %s9, %s7
  $region1: #{tpu_custom_call.1} parent=0
    #allocation2 [shape = 'u8[4096]{0}', space=vmem, size = 0x1000, scoped, tag = 'output window, operand 0, single buffered']
    #allocation3 [shape = 's32[1]{0}', space=sflag, size = 0x4, scoped, tag = 'scoped memory for tpu_custom_call.1']
    #allocation4 [shape = 'u8[4096]{0}', space=vmem, size = 0x1000, scoped, tag = 'output window, operand 1, single buffered']
    #allocation5 [shape = 's32[1]{0}', space=sflag, size = 0x4, scoped, tag = 'scoped memory for tpu_custom_call.1']
    %11 = vsyncpa [#allocation3], 0
    %12 = vsyncpa [#allocation5], 0
    // Predicated region
    $region2: #{tpu_custom_call.1} parent=1 // pred_check
      _
    $region3: #{tpu_custom_call.1} parent=1 // pred_check_branch
      %14 = sbr.rel (0) target = $region5
    $region4: #{tpu_custom_call.1} parent=1 // pred_region
      _
    $region5: #{tpu_custom_call.1} parent=1 // pred_fallthru
      _
    // Predicated region
    $region6: #{tpu_custom_call.1} parent=1 // pred_check
      _
    $region7: #{tpu_custom_call.1} parent=1 // pred_check_branch
      %16 = sbr.rel (0) target = $region9
    $region8: #{tpu_custom_call.1} parent=1 // pred_region
      _
    $region9: #{tpu_custom_call.1} parent=1 // pred_fallthru
      _
    // Predicated region
    $region10: #{tpu_custom_call.1} parent=1 // pred_check
      _
    $region11: #{tpu_custom_call.1} parent=1 // pred_check_branch
      %18 = sbr.rel (0) target = $region13
    $region12: #{tpu_custom_call.1} parent=1 // pred_region
      _
    $region13: #{tpu_custom_call.1} parent=1 // pred_fallthru
      _
    // Predicated region
    $region14: #{tpu_custom_call.1} parent=1 // pred_check
      _
    $region15: #{tpu_custom_call.1} parent=1 // pred_check_branch
      %20 = sbr.rel (0) target = $region17
    $region16: #{tpu_custom_call.1} parent=1 // pred_region
      _
    $region17: #{tpu_custom_call.1} parent=1 // pred_fallthru
      _
    %v21 = vld [vmem:[%s0] sm:$0xff]
    %v22 = vld [vmem:[%s1] sm:$0xff]
    %v23 = vld [vmem:[%s1 + $0x8] sm:$0xff]
    %v24 = vld [vmem:[%s1 + $0x10] sm:$0xff]
    %v25 = vld [vmem:[%s1 + $0x18] sm:$0xff]
    %v26 = vld [vmem:[%s2] sm:$0x1]
    %v28 = vlaneseq
    %v29 = vshrl.u32 %v28, 7
    %v30 = vsub.s32 0, %v29
    %v31 = vrot.slane %v26, %v30
    %vm33 = vcmask 261120
    %v35 = vsel %vm33, %v21, 0
    %37 = vmatprep.subr.mxu0 0.0
    %38 = vmatpush1.msra.mxu0 %v22
    %39 = vmatprep.subr.mxu0 0.0
    %40 = vmatpush1.msra.mxu0 %v23
    %41 = vmatprep.subr.mxu0 0.0
    %42 = vmatpush1.msra.mxu0 %v24
    %43 = vmatprep.subr.mxu0 0.0
    %44 = vmatpush1.msra.mxu0 %v25
    %45 = vmatprep.subr.mxu0 0.0
    %46 = vmatpush1.msra.mxu0 0.0
    %47 = vmatprep.subr.mxu0 0.0
    %48 = vmatpush1.msra.mxu0 0.0
    %49 = vmatprep.subr.mxu0 0.0
    %50 = vmatpush1.msra.mxu0 0.0
    %51 = vmatprep.subr.mxu0 0.0
    %52 = vmatpush1.msra.mxu0 0.0
    %53 = vmatprep.subr.mxu0 0.0
    %54 = vmatpush1.msra.mxu0 0.0
    %55 = vmatprep.subr.mxu0 0.0
    %56 = vmatpush1.msra.mxu0 0.0
    %57 = vmatprep.subr.mxu0 0.0
    %58 = vmatpush1.msra.mxu0 0.0
    %59 = vmatprep.subr.mxu0 0.0
    %60 = vmatpush1.msra.mxu0 0.0
    %61 = vmatprep.subr.mxu0 0.0
    %62 = vmatpush1.msra.mxu0 0.0
    %63 = vmatprep.subr.mxu0 0.0
    %64 = vmatpush1.msra.mxu0 0.0
    %65 = vmatprep.subr.mxu0 0.0
    %66 = vmatpush1.msra.mxu0 0.0
    %67 = vmatprep.subr.mxu0 0.0
    %68 = vmatpush1.msra.mxu0 0.0
    %69 = vmatprep.subr.mxu0 0.0
    %70 = vmatpush1.msra.mxu0 0.0
    %71 = vmatprep.subr.mxu0 0.0
    %72 = vmatpush1.msra.mxu0 0.0
    %73 = vmatprep.subr.mxu0 0.0
    %74 = vmatpush1.msra.mxu0 0.0
    %75 = vmatprep.subr.mxu0 0.0
    %76 = vmatpush1.msra.mxu0 0.0
    %77 = vmatprep.subr.mxu0 0.0
    %78 = vmatpush1.msra.mxu0 0.0
    %79 = vmatprep.subr.mxu0 0.0
    %80 = vmatpush1.msra.mxu0 0.0
    %81 = vmatprep.subr.mxu0 0.0
    %82 = vmatpush1.msra.mxu0 0.0
    %83 = vmatprep.subr.mxu0 0.0
    %84 = vmatpush1.msra.mxu0 0.0
    %85 = vmatprep.subr.mxu0 0.0
    %86 = vmatpush1.msra.mxu0 0.0
    %87 = vmatprep.subr.mxu0 0.0
    %88 = vmatpush1.msra.mxu0 0.0
    %89 = vmatprep.subr.mxu0 0.0
    %90 = vmatpush1.msra.mxu0 0.0
    %91 = vmatprep.subr.mxu0 0.0
    %92 = vmatpush1.msra.mxu0 0.0
    %93 = vmatprep.subr.mxu0 0.0
    %94 = vmatpush1.msra.mxu0 0.0
    %95 = vmatprep.subr.mxu0 0.0
    %96 = vmatpush1.msra.mxu0 0.0
    %97 = vmatprep.subr.mxu0 0.0
    %98 = vmatpush1.msra.mxu0 0.0
    %99 = vmatprep.subr.mxu0 0.0
    %100 = vmatpush1.msra.mxu0 0.0
    %101 = vmatprep.mubr.f32.mxu0 0.0
    %102 = vmatmul.mubr.f32.gmra.mrb[0].mxu0 %v35
    %v103 = vpop.f32.mrb[0].mxu0
    %v104 = vadd.f32 %v31, %v103
    %v105 = vpop.f32.mrb[0].mxu0
    %106 = vdwg.mxu0
    %vm107 = vcmask 64512
    %108 = vst.msk [vmem:[#allocation2] sm:$0xff] %vm107, %v104
    %v109 = vld [vmem:[%s3] sm:$0xff]
    %v110 = vld [vmem:[%s3 + $0x8] sm:$0xff]
    %v111 = vld [vmem:[%s3 + $0x10] sm:$0xff]
    %v112 = vld [vmem:[%s3 + $0x18] sm:$0xff]
    %v113 = vld [vmem:[%s3 + $0x20] sm:$0xff]
    %v114 = vld [vmem:[%s3 + $0x28] sm:$0xff]
    %v115 = vld [vmem:[%s3 + $0x30] sm:$0xff]
    %v116 = vld [vmem:[%s3 + $0x38] sm:$0xff]
    %v117 = vld [vmem:[%s3 + $0x40] sm:$0xff]
    %v118 = vld [vmem:[%s3 + $0x48] sm:$0xff]
    %v119 = vld [vmem:[%s3 + $0x50] sm:$0xff]
    %v120 = vld [vmem:[%s3 + $0x58] sm:$0xff]
    %v121 = vld [vmem:[%s3 + $0x60] sm:$0xff]
    %v122 = vld [vmem:[%s3 + $0x68] sm:$0xff]
    %v123 = vld [vmem:[%s3 + $0x70] sm:$0xff]
    %v124 = vld [vmem:[%s3 + $0x78] sm:$0xff]
    %125 = vmatprep.subr.mxu0 0.0
    %126 = vmatpush1.msra.mxu0 %v109
    %127 = vmatprep.subr.mxu0 0.0
    %128 = vmatpush1.msra.mxu0 %v110
    %129 = vmatprep.subr.mxu0 0.0
    %130 = vmatpush1.msra.mxu0 %v111
    %131 = vmatprep.subr.mxu0 0.0
    %132 = vmatpush1.msra.mxu0 %v112
    %133 = vmatprep.subr.mxu0 0.0
    %134 = vmatpush1.msra.mxu0 %v113
    %135 = vmatprep.subr.mxu0 0.0
    %136 = vmatpush1.msra.mxu0 %v114
    %137 = vmatprep.subr.mxu0 0.0
    %138 = vmatpush1.msra.mxu0 %v115
    %139 = vmatprep.subr.mxu0 0.0
    %140 = vmatpush1.msra.mxu0 %v116
    %141 = vmatprep.subr.mxu0 0.0
    %142 = vmatpush1.msra.mxu0 %v117
    %143 = vmatprep.subr.mxu0 0.0
    %144 = vmatpush1.msra.mxu0 %v118
    %145 = vmatprep.subr.mxu0 0.0
    %146 = vmatpush1.msra.mxu0 %v119
    %147 = vmatprep.subr.mxu0 0.0
    %148 = vmatpush1.msra.mxu0 %v120
    %149 = vmatprep.subr.mxu0 0.0
    %150 = vmatpush1.msra.mxu0 %v121
    %151 = vmatprep.subr.mxu0 0.0
    %152 = vmatpush1.msra.mxu0 %v122
    %153 = vmatprep.subr.mxu0 0.0
    %154 = vmatpush1.msra.mxu0 %v123
    %155 = vmatprep.subr.mxu0 0.0
    %156 = vmatpush1.msra.mxu0 %v124
    %157 = vmatprep.subr.mxu0 0.0
    %158 = vmatpush1.msra.mxu0 0.0
    %159 = vmatprep.subr.mxu0 0.0
    %160 = vmatpush1.msra.mxu0 0.0
    %161 = vmatprep.subr.mxu0 0.0
    %162 = vmatpush1.msra.mxu0 0.0
    %163 = vmatprep.subr.mxu0 0.0
    %164 = vmatpush1.msra.mxu0 0.0
    %165 = vmatprep.subr.mxu0 0.0
    %166 = vmatpush1.msra.mxu0 0.0
    %167 = vmatprep.subr.mxu0 0.0
    %168 = vmatpush1.msra.mxu0 0.0
    %169 = vmatprep.subr.mxu0 0.0
    %170 = vmatpush1.msra.mxu0 0.0
    %171 = vmatprep.subr.mxu0 0.0
    %172 = vmatpush1.msra.mxu0 0.0
    %173 = vmatprep.subr.mxu0 0.0
    %174 = vmatpush1.msra.mxu0 0.0
    %175 = vmatprep.subr.mxu0 0.0
    %176 = vmatpush1.msra.mxu0 0.0
    %177 = vmatprep.subr.mxu0 0.0
    %178 = vmatpush1.msra.mxu0 0.0
    %179 = vmatprep.subr.mxu0 0.0
    %180 = vmatpush1.msra.mxu0 0.0
    %181 = vmatprep.subr.mxu0 0.0
    %182 = vmatpush1.msra.mxu0 0.0
    %183 = vmatprep.subr.mxu0 0.0
    %184 = vmatpush1.msra.mxu0 0.0
    %185 = vmatprep.subr.mxu0 0.0
    %186 = vmatpush1.msra.mxu0 0.0
    %187 = vmatprep.subr.mxu0 0.0
    %188 = vmatpush1.msra.mxu0 0.0
    %189 = vmatprep.mubr.f32.mxu0 0.0
    %190 = vmatmul.mubr.f32.gmra.mrb[0].mxu0 %v104
    %v191 = vpop.f32.mrb[0].mxu0
    %v192 = vadd.f32 0.0, %v191
    %v193 = vpop.f32.mrb[0].mxu0
    %194 = vdwg.mxu0
    %195 = vst.msk [vmem:[#allocation4] sm:$0xff] %vm33, %v192
    // Predicated region
    $region18: #{tpu_custom_call.1} parent=1 // pred_check
      _
    $region19: #{tpu_custom_call.1} parent=1 // pred_check_branch
      %197 = sbr.rel (0) target = $region21
    $region20: #{tpu_custom_call.1} parent=1 // pred_region
      %s199 = ssub.s32 128, 128
      %200 = vsyncadd [#allocation3], %s199
      %s202 = sshll.u32 [#allocation2], 4
      %s203 = int_to_ptr.vmem [resolvable:$true] %s202
      %205 = dma.vmem_to_hbm [thread:$0]  %s203, 128, %s4, [#allocation3]
    $region21: #{tpu_custom_call.1} parent=1 // pred_fallthru
      _
    // Predicated region
    $region22: #{tpu_custom_call.1} parent=1 // pred_check
      _
    $region23: #{tpu_custom_call.1} parent=1 // pred_check_branch
      %207 = sbr.rel (0) target = $region25
    $region24: #{tpu_custom_call.1} parent=1 // pred_region
      %s209 = ssub.s32 128, 128
      %210 = vsyncadd [#allocation5], %s209
      %s212 = sshll.u32 [#allocation4], 4
      %s213 = int_to_ptr.vmem [resolvable:$true] %s212
      %215 = dma.vmem_to_hbm [thread:$0]  %s213, 128, %s5, [#allocation5]
    $region25: #{tpu_custom_call.1} parent=1 // pred_fallthru
      _
    // Predicated region
    $region26: #{tpu_custom_call.1} parent=1 // pred_check
      _
    $region27: #{tpu_custom_call.1} parent=1 // pred_check_branch
      %217 = sbr.rel (0) target = $region29
    $region28: #{tpu_custom_call.1} parent=1 // pred_region
      %218 = dma.done [#allocation3], 128
    $region29: #{tpu_custom_call.1} parent=1 // pred_fallthru
      _
    // Predicated region
    $region30: #{tpu_custom_call.1} parent=1 // pred_check
      _
    $region31: #{tpu_custom_call.1} parent=1 // pred_check_branch
      %220 = sbr.rel (0) target = $region33
    $region32: #{tpu_custom_call.1} parent=1 // pred_region
      %221 = dma.done [#allocation5], 128
    $region33: #{tpu_custom_call.1} parent=1 // pred_fallthru
      _
    %222 = vsyncpa [#allocation3], 1
    %223 = vsyncpa [#allocation5], 1

</llo_original>
